<compile_context>
chip_gen: v6e
topology: v6e:2x2x1
jax: 0.10.0
libtpu: 0.0.40
codegen_flags: <defaults>
</compile_context>

<pallas_src>
import functools

import jax
import jax.numpy as jnp
from jax.experimental import pallas as pl
from jax.experimental.pallas import tpu as pltpu

WIN_H = 3
WIN_W = 3
NUM_NEIGHBORS = WIN_H * WIN_W - 1      # 8
CUT = 0.0
EPS = 1e-12                            # F.normalize eps


# --------------------------------------------------------------------------
# Shared per-tile compute (symmetry + post-scaled normalization).
# --------------------------------------------------------------------------
def _affinity_from_tile(x_tile, out_ref, *, W, d, tile_h, use_roll):
    """Compute the 8 affinity maps for one halo'd tile.

    x_tile : (C, thp, Wt) array, thp = tile_h + 2d.  Rows [d, d + tile_h) are
             the tile's own rows; the d rows on either side are halo (real
             neighbor rows or zero padding).  Wt == W on the roll path,
             W + 2d (zero-padded columns) on the fallback path.
    out_ref: (1, 8, tile_h, W) output block.
    """
    thp = tile_h + 2 * d
    rows_f = tile_h + d                  # rows over which forward maps are built
    x = x_tile.astype(jnp.float32)       # single f32 working copy

    # inverse norms: 1 / max(||x||_2, eps) == rsqrt(max(sum x^2, eps^2))
    inv = jax.lax.rsqrt(jnp.maximum(jnp.sum(x * x, axis=0), EPS * EPS))  # (thp, Wt)

    # Row-shifted operands shared by the three dh=+d forward neighbors.
    x_lo, x_hi = x[:, 0:rows_f, :], x[:, d:thp, :]
    inv_lo, inv_hi = inv[0:rows_f, :], inv[d:thp, :]

    def dot_c(a, b):                     # channel dot -> 2-D plane
        return jnp.sum(a * b, axis=0)

    def store(ch, plane):                # plane already clamped, (tile_h, W)
        out_ref[0, ch] = plane.astype(out_ref.dtype)

    if use_roll:
        # Lane-aligned path (W % 128 == 0, Wt == W): horizontal +-d shifts are
        # XLU lane rolls + border masks.
        def lroll(a, s):                 # out[..., w] = a[..., w + s] (circular)
            return pltpu.roll(a, shift=(-s) % W, axis=a.ndim - 1)

        col = jax.lax.broadcasted_iota(jnp.int32, (1, W), 1)
        ok_r = col < (W - d)             # neighbor column w + d in bounds
        ok_l = col >= d                  # neighbor column w - d in bounds

        # ---- R (0,+d)  /  L (0,-d) ----
        aff = dot_c(x_lo, lroll(x_lo, d)) * inv_lo * lroll(inv_lo, d)
        aff = jnp.maximum(jnp.where(ok_r, aff, 0.0), CUT)            # (rows_f, W)
        store(4, aff[d:rows_f, :])                                   # R
        store(3, jnp.where(ok_l, lroll(aff, -d), 0.0)[d:rows_f, :])  # L

        # ---- D (+d,0)  /  U (-d,0) ----
        aff = jnp.maximum(dot_c(x_lo, x_hi) * inv_lo * inv_hi, CUT)  # (rows_f, W)
        store(6, aff[d:rows_f, :])                                   # D
        store(1, aff[0:tile_h, :])                                   # U

        # ---- DR (+d,+d)  /  UL (-d,-d) ----
        aff = dot_c(x_lo, lroll(x_hi, d)) * inv_lo * lroll(inv_hi, d)
        aff = jnp.maximum(jnp.where(ok_r, aff, 0.0), CUT)
        store(7, aff[d:rows_f, :])                                   # DR
        store(0, jnp.where(ok_l, lroll(aff, -d), 0.0)[0:tile_h, :])  # UL

        # ---- DL (+d,-d)  /  UR (-d,+d) ----
        aff = dot_c(x_lo, lroll(x_hi, -d)) * inv_lo * lroll(inv_hi, -d)
        aff = jnp.maximum(jnp.where(ok_l, aff, 0.0), CUT)
        store(5, aff[d:rows_f, :])                                   # DL
        store(2, jnp.where(ok_r, lroll(aff, d), 0.0)[0:tile_h, :])   # UR
    else:
        # Width-padded fallback (Wt = W + 2d): horizontal shifts are static
        # slices; the zero column padding supplies the border zeros, so no
        # masks are needed.  Buffer column cb corresponds to image column cb-d.
        We = W + d   # extended column window so opposite maps are pure slices

        # ---- R (0,+d)  /  L (0,-d): plane col p <-> image col p - d ----
        aff = (dot_c(x_lo[:, :, 0:We], x_lo[:, :, d:d + We])
               * inv_lo[:, 0:We] * inv_lo[:, d:d + We])
        aff = jnp.maximum(aff, CUT)                                  # (rows_f, We)
        store(4, aff[d:rows_f, d:d + W])                             # R
        store(3, aff[d:rows_f, 0:W])                                 # L

        # ---- D (+d,0)  /  U (-d,0): plane col p <-> image col p ----
        aff = (dot_c(x_lo[:, :, d:d + W], x_hi[:, :, d:d + W])
               * inv_lo[:, d:d + W] * inv_hi[:, d:d + W])
        aff = jnp.maximum(aff, CUT)                                  # (rows_f, W)
        store(6, aff[d:rows_f, :])                                   # D
        store(1, aff[0:tile_h, :])                                   # U

        # ---- DR (+d,+d)  /  UL (-d,-d): plane col p <-> image col p - d ----
        aff = (dot_c(x_lo[:, :, 0:We], x_hi[:, :, d:d + We])
               * inv_lo[:, 0:We] * inv_hi[:, d:d + We])
        aff = jnp.maximum(aff, CUT)                                  # (rows_f, We)
        store(7, aff[d:rows_f, d:d + W])                             # DR
        store(0, aff[0:tile_h, 0:W])                                 # UL

        # ---- DL (+d,-d)  /  UR (-d,+d): plane col p <-> image col p ----
        aff = (dot_c(x_lo[:, :, d:d + We], x_hi[:, :, 0:We])
               * inv_lo[:, d:d + We] * inv_hi[:, 0:We])
        aff = jnp.maximum(aff, CUT)                                  # (rows_f, We)
        store(5, aff[d:rows_f, 0:W])                                 # DL
        store(2, aff[0:tile_h, d:d + W])                             # UR


# --------------------------------------------------------------------------
# Kernel bodies.
# --------------------------------------------------------------------------
def _affinity_kernel_block(x_ref, out_ref, *, W, d, tile_h, use_roll):
    """n_tiles == 1: input block auto-pipelined by BlockSpec (cross-batch
    overlap handled by the standard Pallas double-buffering)."""
    _affinity_from_tile(x_ref[0], out_ref, W=W, d=d, tile_h=tile_h,
                        use_roll=use_roll)


def _affinity_kernel_dma(x_hbm, out_ref, buf, sem, *, W, d, tile_h, n_tiles,
                         use_roll):
    """n_tiles > 1: input stays in HBM; each step DMAs a halo'd
    (C, tile_h + 2d, Wt) row window into a double-buffered VMEM scratch and
    prefetches the next tile before computing."""
    b = pl.program_id(0)
    t = pl.program_id(1)
    thp = tile_h + 2 * d
    slot = t % 2

    def tile_copy(tile_idx, dst_slot):
        # Clamp keeps the (never-issued) descriptor of the guarded prefetch of
        # a non-existent tile in bounds.
        row0 = jnp.minimum(tile_idx, n_tiles - 1) * tile_h
        return pltpu.make_async_copy(
            x_hbm.at[b, :, pl.ds(row0, thp), :],
            buf.at[dst_slot],
            sem.at[dst_slot],
        )

    # Prologue: fetch this batch member's first tile.
    @pl.when(t == 0)
    def _():
        tile_copy(0, 0).start()

    # Prefetch the next tile into the other slot (tile axis is "arbitrary",
    # i.e. sequential within a batch, so the DMA overlaps this tile's compute).
    @pl.when(t + 1 < n_tiles)
    def _():
        tile_copy(t + 1, 1 - slot).start()

    # Wait for the current tile's DMA, then compute.
    tile_copy(t, slot).wait()
    _affinity_from_tile(buf[slot], out_ref, W=W, d=d, tile_h=tile_h,
                        use_roll=use_roll)


# --------------------------------------------------------------------------
# VMEM sizing (generation aware, layout-padding aware).
# --------------------------------------------------------------------------
def _round_up(v, m):
    return -(-v // m) * m


def _vmem_capacity_bytes(default=64 << 20):
    try:
        info = pltpu.get_tpu_info()
        cap = getattr(info, "vmem_capacity_bytes", None)
        if cap:
            return int(cap)
    except Exception:
        pass
    return default  # conservative (v7x per-core)


def _tile_vmem_bytes(tile_h, C, W, Wt, d, in_itemsize, out_itemsize):
    """Per-grid-step working-set estimate, rounded to Mosaic (sublane, lane)
    tiling so small-W / bf16 padding is accounted for."""
    sub_in = 8 if in_itemsize >= 4 else 16
    sub_out = 8 if out_itemsize >= 4 else 16
    thp = tile_h + 2 * d
    rows_f = tile_h + d
    lanes = _round_up(Wt, 128)
    out_lanes = _round_up(W, 128)
    in_buf = 2 * C * _round_up(thp, sub_in) * lanes * in_itemsize        # input dbl buffer
    work = C * (_round_up(thp, 8) + 2 * _round_up(rows_f, 8)) * lanes * 4  # x_f32 + x_hi + 1 shifted nbr
    planes = 12 * _round_up(thp, 8) * lanes * 4                          # inv + 2-D aff planes
    out_buf = 2 * NUM_NEIGHBORS * _round_up(tile_h, sub_out) * out_lanes * out_itemsize
    return in_buf + work + planes + out_buf


def _choose_tile_h(H, C, W, Wt, d, in_itemsize, out_itemsize, budget_bytes):
    """Largest tile height (multiple of the sublane packing that divides H, or
    H itself) whose per-grid-step working set fits the VMEM budget."""
    sub = 16 if (in_itemsize < 4 or out_itemsize < 4) else 8
    cands = [th for th in range(H, 0, -1)
             if H % th == 0 and (th % sub == 0 or th == H)]
    for th in cands:
        if _tile_vmem_bytes(th, C, W, Wt, d, in_itemsize, out_itemsize) <= budget_bytes:
            return th
    return cands[-1]


# --------------------------------------------------------------------------
# Wrapper.
# --------------------------------------------------------------------------
def affinity_feature(feature, *, dilation=1, tile_h=None):
    """feature: (B, C, H, W) f32/bf16 -> (B, 8, H, W), same dtype."""
    B, C, H, W = feature.shape
    d = dilation

    # Lane-aligned fast path: keep W unpadded and do +-d column shifts with
    # pltpu.roll + mask.  For W not a multiple of 128 use a width-padded tile
    # with static slices (alignment is already broken there).
    use_roll = (W % 128 == 0)
    wpad = 0 if use_roll else d
    Wt = W + 2 * wpad

    in_it = jnp.dtype(feature.dtype).itemsize
    out_dtype = feature.dtype
    out_it = jnp.dtype(out_dtype).itemsize

    cap = _vmem_capacity_bytes()
    if tile_h is None:
        tile_h = _choose_tile_h(H, C, W, Wt, d, in_it, out_it,
                                budget_bytes=cap // 2)
    sub = 16 if (in_it < 4 or out_it < 4) else 8
    assert H % tile_h == 0 and (tile_h % sub == 0 or tile_h == H), tile_h
    n_tiles = H // tile_h
    thp = tile_h + 2 * d

    est = _tile_vmem_bytes(tile_h, C, W, Wt, d, in_it, out_it)
    vmem_limit = int(min(max(1.4 * est + (2 << 20), 32 << 20), 0.8 * cap))

    # Zero-pad H by d (halo rows / Unfold zero padding); W only on fallback.
    xp = jnp.pad(feature, ((0, 0), (0, 0), (d, d), (wpad, wpad)))
    out_shape = jax.ShapeDtypeStruct((B, NUM_NEIGHBORS, H, W), out_dtype)

    if n_tiles == 1:
        # Whole (padded) image fits the budget: let BlockSpec auto-pipeline the
        # input so batch b+1's HBM->VMEM copy overlaps batch b's compute.
        kernel = functools.partial(_affinity_kernel_block, W=W, d=d,
                                   tile_h=tile_h, use_roll=use_roll)
        return pl.pallas_call(
            kernel,
            out_shape=out_shape,
            grid_spec=pltpu.PrefetchScalarGridSpec(
                num_scalar_prefetch=0,
                grid=(B,),
                in_specs=[pl.BlockSpec((1, C, thp, Wt), lambda b: (b, 0, 0, 0))],
                out_specs=pl.BlockSpec((1, NUM_NEIGHBORS, H, W),
                                       lambda b: (b, 0, 0, 0)),
            ),
            compiler_params=pltpu.CompilerParams(
                dimension_semantics=("parallel",),
                vmem_limit_bytes=vmem_limit,
            ),
        )(xp)

    # Multiple H-tiles: manual halo'd DMA with double buffering.
    kernel = functools.partial(_affinity_kernel_dma, W=W, d=d, tile_h=tile_h,
                               n_tiles=n_tiles, use_roll=use_roll)
    return pl.pallas_call(
        kernel,
        out_shape=out_shape,
        grid_spec=pltpu.PrefetchScalarGridSpec(
            num_scalar_prefetch=0,
            grid=(B, n_tiles),
            in_specs=[pl.BlockSpec(memory_space=pl.ANY)],   # stays in HBM
            out_specs=pl.BlockSpec((1, NUM_NEIGHBORS, tile_h, W),
                                   lambda b, t: (b, 0, t, 0)),
            scratch_shapes=[
                pltpu.VMEM((2, C, thp, Wt), feature.dtype),  # input double buffer
                pltpu.SemaphoreType.DMA((2,)),
            ],
        ),
        compiler_params=pltpu.CompilerParams(
            # Batch axis parallel (megacore on v7x); tile axis must stay
            # sequential because of the cross-step input-prefetch chain.
            dimension_semantics=("parallel", "arbitrary"),
            vmem_limit_bytes=vmem_limit,
        ),
    )(xp)


# --------------------------------------------------------------------------
# Pure-JAX reference mirroring the PyTorch forward (f32).
# --------------------------------------------------------------------------
def _affinity_reference(feature, *, dilation=1):
    B, C, H, W = feature.shape
    d = dilation
    norm = jnp.sqrt(jnp.sum(feature * feature, axis=1, keepdims=True))
    fn = feature / jnp.maximum(norm, EPS)
    fp = jnp.pad(fn, ((0, 0), (0, 0), (d, d), (d, d)))
    outs = []
    for k in range(WIN_H * WIN_W):
        if k == (WIN_H * WIN_W) // 2:
            continue
        kh, kw = k // WIN_W, k % WIN_W
        nb = fp[:, :, kh * d:kh * d + H, kw * d:kw * d + W]
        outs.append(jnp.sum(nb * fn, axis=1))
    aff = jnp.stack(outs, axis=1)
    return jnp.maximum(aff, CUT)


if __name__ == "__main__":
    root = jax.random.PRNGKey(0)
    k0, k1, k2 = jax.random.split(root, 3)

    # 1) Small fallback-path shape (W=16), single tile (auto-pipelined path).
    B, C, H, W = 2, 4, 16, 16
    x = jax.random.normal(k0, (B, C, H, W), dtype=jnp.float32)
    ref = _affinity_reference(x)
    out = jax.block_until_ready(affinity_feature(x))
    assert out.shape == (B, NUM_NEIGHBORS, H, W)
    assert jnp.allclose(out, ref, atol=1e-5, rtol=1e-5)

    # 2) Force two H-tiles -> manual halo'd double-buffered DMA path.
    out_tiled = jax.block_until_ready(affinity_feature(x, tile_h=8))
    assert jnp.allclose(out_tiled, ref, atol=1e-5, rtol=1e-5)

    # 3) Lane-aligned roll path (W % 128 == 0), single tile.
    x128 = jax.random.normal(k1, (2, 4, 16, 128), dtype=jnp.float32)
    ref128 = _affinity_reference(x128)
    out128 = jax.block_until_ready(affinity_feature(x128))
    assert jnp.allclose(out128, ref128, atol=1e-5, rtol=1e-5)

    # 4) Lane-aligned roll path with 4 H-tiles (halo + cross-tile prefetch).
    x32 = jax.random.normal(k2, (2, 4, 32, 128), dtype=jnp.float32)
    ref32 = _affinity_reference(x32)
    out32 = jax.block_until_ready(affinity_feature(x32, tile_h=8))
    assert jnp.allclose(out32, ref32, atol=1e-5, rtol=1e-5)

    # 5) bf16 I/O (f32 accumulation inside the kernel).
    xb = x.astype(jnp.bfloat16)
    out_bf16 = jax.block_until_ready(affinity_feature(xb))
    ref_bf16 = _affinity_reference(xb.astype(jnp.float32))
    assert out_bf16.dtype == jnp.bfloat16
    assert jnp.allclose(out_bf16.astype(jnp.float32), ref_bf16,
                        atol=3e-2, rtol=3e-2)

    print("KERNEL_OK")
</pallas_src>

<mosaic_0001>
module attributes {stable_mosaic.version = 11 : i64} {
  func.func @_affinity_kernel_block(%arg0: i32, %arg1: memref<1x4x18x18xf32, #tpu.memory_space<vmem>>, %arg2: memref<1x8x16x16xf32, #tpu.memory_space<vmem>>) attributes {dimension_semantics = [#tpu.dimension_semantics<parallel>], iteration_bounds = array<i64: 2>, scalar_prefetch = 0 : i64, scratch_operands = 0 : i64, tpu.core_type = #tpu.core_type<tc>, window_params = [{transform_indices = @transform_0, window_bounds = array<i64: 1, 4, 18, 18>}, {transform_indices = @transform_1, window_bounds = array<i64: 1, 8, 16, 16>}]} {
    %c0 = arith.constant 0 : index
    %c0_0 = arith.constant 0 : index
    %c0_1 = arith.constant 0 : index
    %c0_2 = arith.constant 0 : index
    %0 = vector.load %arg1[%c0, %c0_0, %c0_1, %c0_2] : memref<1x4x18x18xf32, #tpu.memory_space<vmem>>, vector<1x4x18x18xf32>
    %1 = vector.shape_cast %0 : vector<1x4x18x18xf32> to vector<4x18x18xf32>
    %2 = arith.mulf %1, %1 : vector<4x18x18xf32>
    %cst = arith.constant dense<0.000000e+00> : vector<18x18xf32>
    %3 = vector.multi_reduction <add>, %2, %cst [0] : vector<4x18x18xf32> to vector<18x18xf32>
    %cst_3 = arith.constant 1.000000e-24 : f32
    %4 = vector.broadcast %cst_3 : f32 to vector<18x18xf32>
    %5 = arith.maximumf %3, %4 : vector<18x18xf32>
    %6 = math.rsqrt %5 : vector<18x18xf32>
    %7 = vector.extract_strided_slice %1 {offsets = [0, 0, 0], sizes = [4, 17, 18], strides = [1, 1, 1]} : vector<4x18x18xf32> to vector<4x17x18xf32>
    %8 = vector.extract_strided_slice %1 {offsets = [0, 1, 0], sizes = [4, 17, 18], strides = [1, 1, 1]} : vector<4x18x18xf32> to vector<4x17x18xf32>
    %9 = vector.extract_strided_slice %6 {offsets = [0, 0], sizes = [17, 18], strides = [1, 1]} : vector<18x18xf32> to vector<17x18xf32>
    %10 = vector.extract_strided_slice %6 {offsets = [1, 0], sizes = [17, 18], strides = [1, 1]} : vector<18x18xf32> to vector<17x18xf32>
    %11 = vector.extract_strided_slice %7 {offsets = [0, 0, 0], sizes = [4, 17, 17], strides = [1, 1, 1]} : vector<4x17x18xf32> to vector<4x17x17xf32>
    %12 = vector.extract_strided_slice %7 {offsets = [0, 0, 1], sizes = [4, 17, 17], strides = [1, 1, 1]} : vector<4x17x18xf32> to vector<4x17x17xf32>
    %13 = arith.mulf %11, %12 : vector<4x17x17xf32>
    %cst_4 = arith.constant dense<0.000000e+00> : vector<17x17xf32>
    %14 = vector.multi_reduction <add>, %13, %cst_4 [0] : vector<4x17x17xf32> to vector<17x17xf32>
    %15 = vector.extract_strided_slice %9 {offsets = [0, 0], sizes = [17, 17], strides = [1, 1]} : vector<17x18xf32> to vector<17x17xf32>
    %16 = arith.mulf %14, %15 : vector<17x17xf32>
    %17 = vector.extract_strided_slice %9 {offsets = [0, 1], sizes = [17, 17], strides = [1, 1]} : vector<17x18xf32> to vector<17x17xf32>
    %18 = arith.mulf %16, %17 : vector<17x17xf32>
    %cst_5 = arith.constant 0.000000e+00 : f32
    %19 = vector.broadcast %cst_5 : f32 to vector<17x17xf32>
    %20 = arith.maximumf %18, %19 : vector<17x17xf32>
    %21 = vector.extract_strided_slice %20 {offsets = [1, 1], sizes = [16, 16], strides = [1, 1]} : vector<17x17xf32> to vector<16x16xf32>
    %c0_6 = arith.constant 0 : index
    %c4 = arith.constant 4 : index
    %c0_7 = arith.constant 0 : index
    %c0_8 = arith.constant 0 : index
    %22 = vector.load %arg2[%c0_6, %c4, %c0_7, %c0_8] : memref<1x8x16x16xf32, #tpu.memory_space<vmem>>, vector<1x1x16x16xf32>
    %23 = vector.shape_cast %22 : vector<1x1x16x16xf32> to vector<16x16xf32>
    %24 = vector.shape_cast %21 : vector<16x16xf32> to vector<1x1x16x16xf32>
    tpu.vector_store %arg2[%c0_6, %c4, %c0_7, %c0_8], %24 {strides = array<i32>} : memref<1x8x16x16xf32, #tpu.memory_space<vmem>>, vector<1x1x16x16xf32>,
    %25 = vector.extract_strided_slice %20 {offsets = [1, 0], sizes = [16, 16], strides = [1, 1]} : vector<17x17xf32> to vector<16x16xf32>
    %c0_9 = arith.constant 0 : index
    %c3 = arith.constant 3 : index
    %c0_10 = arith.constant 0 : index
    %c0_11 = arith.constant 0 : index
    %26 = vector.load %arg2[%c0_9, %c3, %c0_10, %c0_11] : memref<1x8x16x16xf32, #tpu.memory_space<vmem>>, vector<1x1x16x16xf32>
    %27 = vector.shape_cast %26 : vector<1x1x16x16xf32> to vector<16x16xf32>
    %28 = vector.shape_cast %25 : vector<16x16xf32> to vector<1x1x16x16xf32>
    tpu.vector_store %arg2[%c0_9, %c3, %c0_10, %c0_11], %28 {strides = array<i32>} : memref<1x8x16x16xf32, #tpu.memory_space<vmem>>, vector<1x1x16x16xf32>,
    %29 = vector.extract_strided_slice %7 {offsets = [0, 0, 1], sizes = [4, 17, 16], strides = [1, 1, 1]} : vector<4x17x18xf32> to vector<4x17x16xf32>
    %30 = vector.extract_strided_slice %8 {offsets = [0, 0, 1], sizes = [4, 17, 16], strides = [1, 1, 1]} : vector<4x17x18xf32> to vector<4x17x16xf32>
    %31 = arith.mulf %29, %30 : vector<4x17x16xf32>
    %cst_12 = arith.constant dense<0.000000e+00> : vector<17x16xf32>
    %32 = vector.multi_reduction <add>, %31, %cst_12 [0] : vector<4x17x16xf32> to vector<17x16xf32>
    %33 = vector.extract_strided_slice %9 {offsets = [0, 1], sizes = [17, 16], strides = [1, 1]} : vector<17x18xf32> to vector<17x16xf32>
    %34 = arith.mulf %32, %33 : vector<17x16xf32>
    %35 = vector.extract_strided_slice %10 {offsets = [0, 1], sizes = [17, 16], strides = [1, 1]} : vector<17x18xf32> to vector<17x16xf32>
    %36 = arith.mulf %34, %35 : vector<17x16xf32>
    %cst_13 = arith.constant 0.000000e+00 : f32
    %37 = vector.broadcast %cst_13 : f32 to vector<17x16xf32>
    %38 = arith.maximumf %36, %37 : vector<17x16xf32>
    %39 = vector.extract_strided_slice %38 {offsets = [1, 0], sizes = [16, 16], strides = [1, 1]} : vector<17x16xf32> to vector<16x16xf32>
    %c0_14 = arith.constant 0 : index
    %c6 = arith.constant 6 : index
    %c0_15 = arith.constant 0 : index
    %c0_16 = arith.constant 0 : index
    %40 = vector.load %arg2[%c0_14, %c6, %c0_15, %c0_16] : memref<1x8x16x16xf32, #tpu.memory_space<vmem>>, vector<1x1x16x16xf32>
    %41 = vector.shape_cast %40 : vector<1x1x16x16xf32> to vector<16x16xf32>
    %42 = vector.shape_cast %39 : vector<16x16xf32> to vector<1x1x16x16xf32>
    tpu.vector_store %arg2[%c0_14, %c6, %c0_15, %c0_16], %42 {strides = array<i32>} : memref<1x8x16x16xf32, #tpu.memory_space<vmem>>, vector<1x1x16x16xf32>,
    %43 = vector.extract_strided_slice %38 {offsets = [0, 0], sizes = [16, 16], strides = [1, 1]} : vector<17x16xf32> to vector<16x16xf32>
    %c0_17 = arith.constant 0 : index
    %c1 = arith.constant 1 : index
    %c0_18 = arith.constant 0 : index
    %c0_19 = arith.constant 0 : index
    %44 = vector.load %arg2[%c0_17, %c1, %c0_18, %c0_19] : memref<1x8x16x16xf32, #tpu.memory_space<vmem>>, vector<1x1x16x16xf32>
    %45 = vector.shape_cast %44 : vector<1x1x16x16xf32> to vector<16x16xf32>
    %46 = vector.shape_cast %43 : vector<16x16xf32> to vector<1x1x16x16xf32>
    tpu.vector_store %arg2[%c0_17, %c1, %c0_18, %c0_19], %46 {strides = array<i32>} : memref<1x8x16x16xf32, #tpu.memory_space<vmem>>, vector<1x1x16x16xf32>,
    %47 = vector.extract_strided_slice %7 {offsets = [0, 0, 0], sizes = [4, 17, 17], strides = [1, 1, 1]} : vector<4x17x18xf32> to vector<4x17x17xf32>
    %48 = vector.extract_strided_slice %8 {offsets = [0, 0, 1], sizes = [4, 17, 17], strides = [1, 1, 1]} : vector<4x17x18xf32> to vector<4x17x17xf32>
    %49 = arith.mulf %47, %48 : vector<4x17x17xf32>
    %cst_20 = arith.constant dense<0.000000e+00> : vector<17x17xf32>
    %50 = vector.multi_reduction <add>, %49, %cst_20 [0] : vector<4x17x17xf32> to vector<17x17xf32>
    %51 = vector.extract_strided_slice %9 {offsets = [0, 0], sizes = [17, 17], strides = [1, 1]} : vector<17x18xf32> to vector<17x17xf32>
    %52 = arith.mulf %50, %51 : vector<17x17xf32>
    %53 = vector.extract_strided_slice %10 {offsets = [0, 1], sizes = [17, 17], strides = [1, 1]} : vector<17x18xf32> to vector<17x17xf32>
    %54 = arith.mulf %52, %53 : vector<17x17xf32>
    %cst_21 = arith.constant 0.000000e+00 : f32
    %55 = vector.broadcast %cst_21 : f32 to vector<17x17xf32>
    %56 = arith.maximumf %54, %55 : vector<17x17xf32>
    %57 = vector.extract_strided_slice %56 {offsets = [1, 1], sizes = [16, 16], strides = [1, 1]} : vector<17x17xf32> to vector<16x16xf32>
    %c0_22 = arith.constant 0 : index
    %c7 = arith.constant 7 : index
    %c0_23 = arith.constant 0 : index
    %c0_24 = arith.constant 0 : index
    %58 = vector.load %arg2[%c0_22, %c7, %c0_23, %c0_24] : memref<1x8x16x16xf32, #tpu.memory_space<vmem>>, vector<1x1x16x16xf32>
    %59 = vector.shape_cast %58 : vector<1x1x16x16xf32> to vector<16x16xf32>
    %60 = vector.shape_cast %57 : vector<16x16xf32> to vector<1x1x16x16xf32>
    tpu.vector_store %arg2[%c0_22, %c7, %c0_23, %c0_24], %60 {strides = array<i32>} : memref<1x8x16x16xf32, #tpu.memory_space<vmem>>, vector<1x1x16x16xf32>,
    %61 = vector.extract_strided_slice %56 {offsets = [0, 0], sizes = [16, 16], strides = [1, 1]} : vector<17x17xf32> to vector<16x16xf32>
    %c0_25 = arith.constant 0 : index
    %c0_26 = arith.constant 0 : index
    %c0_27 = arith.constant 0 : index
    %c0_28 = arith.constant 0 : index
    %62 = vector.load %arg2[%c0_25, %c0_26, %c0_27, %c0_28] : memref<1x8x16x16xf32, #tpu.memory_space<vmem>>, vector<1x1x16x16xf32>
    %63 = vector.shape_cast %62 : vector<1x1x16x16xf32> to vector<16x16xf32>
    %64 = vector.shape_cast %61 : vector<16x16xf32> to vector<1x1x16x16xf32>
    tpu.vector_store %arg2[%c0_25, %c0_26, %c0_27, %c0_28], %64 {strides = array<i32>} : memref<1x8x16x16xf32, #tpu.memory_space<vmem>>, vector<1x1x16x16xf32>,
    %65 = vector.extract_strided_slice %7 {offsets = [0, 0, 1], sizes = [4, 17, 17], strides = [1, 1, 1]} : vector<4x17x18xf32> to vector<4x17x17xf32>
    %66 = vector.extract_strided_slice %8 {offsets = [0, 0, 0], sizes = [4, 17, 17], strides = [1, 1, 1]} : vector<4x17x18xf32> to vector<4x17x17xf32>
    %67 = arith.mulf %65, %66 : vector<4x17x17xf32>
    %cst_29 = arith.constant dense<0.000000e+00> : vector<17x17xf32>
    %68 = vector.multi_reduction <add>, %67, %cst_29 [0] : vector<4x17x17xf32> to vector<17x17xf32>
    %69 = vector.extract_strided_slice %9 {offsets = [0, 1], sizes = [17, 17], strides = [1, 1]} : vector<17x18xf32> to vector<17x17xf32>
    %70 = arith.mulf %68, %69 : vector<17x17xf32>
    %71 = vector.extract_strided_slice %10 {offsets = [0, 0], sizes = [17, 17], strides = [1, 1]} : vector<17x18xf32> to vector<17x17xf32>
    %72 = arith.mulf %70, %71 : vector<17x17xf32>
    %cst_30 = arith.constant 0.000000e+00 : f32
    %73 = vector.broadcast %cst_30 : f32 to vector<17x17xf32>
    %74 = arith.maximumf %72, %73 : vector<17x17xf32>
    %75 = vector.extract_strided_slice %74 {offsets = [1, 0], sizes = [16, 16], strides = [1, 1]} : vector<17x17xf32> to vector<16x16xf32>
    %c0_31 = arith.constant 0 : index
    %c5 = arith.constant 5 : index
    %c0_32 = arith.constant 0 : index
    %c0_33 = arith.constant 0 : index
    %76 = vector.load %arg2[%c0_31, %c5, %c0_32, %c0_33] : memref<1x8x16x16xf32, #tpu.memory_space<vmem>>, vector<1x1x16x16xf32>
    %77 = vector.shape_cast %76 : vector<1x1x16x16xf32> to vector<16x16xf32>
    %78 = vector.shape_cast %75 : vector<16x16xf32> to vector<1x1x16x16xf32>
    tpu.vector_store %arg2[%c0_31, %c5, %c0_32, %c0_33], %78 {strides = array<i32>} : memref<1x8x16x16xf32, #tpu.memory_space<vmem>>, vector<1x1x16x16xf32>,
    %79 = vector.extract_strided_slice %74 {offsets = [0, 1], sizes = [16, 16], strides = [1, 1]} : vector<17x17xf32> to vector<16x16xf32>
    %c0_34 = arith.constant 0 : index
    %c2 = arith.constant 2 : index
    %c0_35 = arith.constant 0 : index
    %c0_36 = arith.constant 0 : index
    %80 = vector.load %arg2[%c0_34, %c2, %c0_35, %c0_36] : memref<1x8x16x16xf32, #tpu.memory_space<vmem>>, vector<1x1x16x16xf32>
    %81 = vector.shape_cast %80 : vector<1x1x16x16xf32> to vector<16x16xf32>
    %82 = vector.shape_cast %79 : vector<16x16xf32> to vector<1x1x16x16xf32>
    tpu.vector_store %arg2[%c0_34, %c2, %c0_35, %c0_36], %82 {strides = array<i32>} : memref<1x8x16x16xf32, #tpu.memory_space<vmem>>, vector<1x1x16x16xf32>,
    return
  }
  func.func @transform_0(%arg0: i32) -> (i32, i32, i32, i32) {
    %c0_i32 = arith.constant 0 : i32
    %c0_i32_0 = arith.constant 0 : i32
    %c0_i32_1 = arith.constant 0 : i32
    %c0_i32_2 = arith.constant 0 : i32
    return %arg0, %c0_i32, %c0_i32_0, %c0_i32_1 : i32, i32, i32, i32
  }
  func.func @transform_1(%arg0: i32) -> (i32, i32, i32, i32) {
    %c0_i32 = arith.constant 0 : i32
    %c0_i32_0 = arith.constant 0 : i32
    %c0_i32_1 = arith.constant 0 : i32
    %c0_i32_2 = arith.constant 0 : i32
    return %arg0, %c0_i32, %c0_i32_0, %c0_i32_1 : i32, i32, i32, i32
  }
}

</mosaic_0001>

<llo_original>
// kernel: tpu_custom_call.1
$region0: #{tpu_custom_call.1}
  #allocation0 [shape = 'u32[]', space=smem, size = 0x4, offset = 0x4, fixed_abs, tag = 'smem constant byte address 0x4 - core index']
  #allocation1 [shape = 'u32[144,128]{1,0:T(1,128)}', space=vmem, size = 0x12000, scoped, tag = 'internal scratch']
  %s0 = inlined_call_operand.vmem [shape: f32[2,4,18,18], index: 0, kind: input, shape index: {}]
  %s1 = inlined_call_operand.hbm [shape: f32[2,8,16,16], index: 1, kind: output, shape index: {}]
  %s2 = sld [smem:[#allocation0]]
  $region37: #{tpu_custom_call.1} parent=0
    _
  %s4 = ssub.s32 1, %s2
  %s5 = scalar_select 0, %s4, %s2
  $region1: #{tpu_custom_call.1} parent=0
    #allocation2 [shape = 'u8[131072]{0}', space=vmem, size = 0x20000, scoped, tag = 'output window, operand 0']
    #allocation3 [shape = 's32[2]{0}', space=sflag, size = 0x8, scoped, tag = 'scoped memory for tpu_custom_call.1']
    %6 = vsyncpa [#allocation3], 0
    %s7 = scalar_lea.sflag [#allocation3], 1
    %8 = vsyncpa %s7, 0
    loop: start=0, step=1, limit=4
    $region2: #{tpu_custom_call.1} parent=1 // loop_pre_header
      _
    $region3: #{tpu_custom_call.1} parent=1 // loop_header
      %s10 = sphi 0, %s14
      %p11 = scmp.ge.s32.totalorder %s10, 4
      %s20 = sphi 0, %s22
      %s23 = sphi 0, %s20
      %s24 = sphi 0, %s23
      %s40 = sphi 0, %s24
      %s46 = sphi 0, %s48
      %s49 = sphi 0, %s46
      %s50 = sphi 0, %s49
      %s66 = sphi 0, %s50
    $region4: #{tpu_custom_call.1} parent=1 // loop_header_branch
      %13 = sbr.rel (%p11) target = $region8
    $region5: #{tpu_custom_call.1} parent=1 // loop_body
      %s15 = ssub.s32 %s10, 1
      %s16 = ssub.s32 %s10, 2
      %s17 = sadd.s32 %s10, 1
      %s18 = ssub.s32 %s10, %s17
      %p19 = scmp.eq.s32.totalorder %s18, 0
      %s21 = sadd.s32 %s20, 1
      %s22 = scalar_select %p19, %s20, %s21
      %p25 = pneg %p19
      %p26 = scmp.eq.s32.totalorder %s10, 1
      %p27 = por %p25, %p26
      %p28 = scmp.ne.s32.totalorder %s20, %s23
      %p29 = scmp.eq.s32.totalorder %s10, 0
      %p30 = por %p28, %p29
      %p31 = scmp.ne.s32.totalorder %s20, %s23
      %p32 = scmp.eq.s32.totalorder %s15, 1
      %p33 = por %p31, %p32
      %p34 = scmp.ne.s32.totalorder %s23, %s24
      %p35 = scmp.eq.s32.totalorder %s15, 0
      %p36 = por %p34, %p35
      %p37 = scmp.ne.s32.totalorder %s23, %s24
      %p38 = scmp.eq.s32.totalorder %s16, 1
      %p39 = por %p37, %p38
      %p41 = scmp.ne.s32.totalorder %s24, %s40
      %p42 = scmp.eq.s32.totalorder %s16, 0
      %p43 = por %p41, %p42
      %s44 = ssub.s32 %s10, %s17
      %p45 = scmp.eq.s32.totalorder %s44, 0
      %s47 = sadd.s32 %s46, 1
      %s48 = scalar_select %p45, %s46, %s47
      %p51 = pneg %p45
      %p52 = scmp.eq.s32.totalorder %s10, 1
      %p53 = por %p51, %p52
      %p54 = scmp.ne.s32.totalorder %s46, %s49
      %p55 = scmp.eq.s32.totalorder %s10, 0
      %p56 = por %p54, %p55
      %p57 = scmp.ne.s32.totalorder %s46, %s49
      %p58 = scmp.eq.s32.totalorder %s15, 1
      %p59 = por %p57, %p58
      %p60 = scmp.ne.s32.totalorder %s49, %s50
      %p61 = scmp.eq.s32.totalorder %s15, 0
      %p62 = por %p60, %p61
      %p63 = scmp.ne.s32.totalorder %s49, %s50
      %p64 = scmp.eq.s32.totalorder %s16, 1
      %p65 = por %p63, %p64
      %p67 = scmp.ne.s32.totalorder %s50, %s66
      %p68 = scmp.eq.s32.totalorder %s16, 0
      %p69 = por %p67, %p68
      %p70 = scmp.le.s32.totalorder 1, %s10
      %p71 = scmp.lt.s32.totalorder %s10, 3
      %p72 = pnand %p70, %p71
      %p73 = pneg %p72
      // Predicated region
      $region9: #{tpu_custom_call.1} parent=5 // pred_check
        _
      $region10: #{tpu_custom_call.1} parent=5 // pred_check_branch
        %75 = sbr.rel (%p72) target = $region12
      $region11: #{tpu_custom_call.1} parent=5 // pred_region
        %s76 = ssub.s32 %s10, 1
      $region12: #{tpu_custom_call.1} parent=5 // pred_fallthru
        _
      %p77 = scmp.lt.s32.totalorder %s10, 2
      // Predicated region
      $region13: #{tpu_custom_call.1} parent=5 // pred_check
        %p78 = pneg %p77
      $region14: #{tpu_custom_call.1} parent=5 // pred_check_branch
        %80 = sbr.rel (%p78) target = $region16
      $region15: #{tpu_custom_call.1} parent=5 // pred_region
        // Predicated region
        $region17: #{tpu_custom_call.1} parent=15 // pred_check
          %p81 = pneg %p30
        $region18: #{tpu_custom_call.1} parent=15 // pred_check_branch
          %83 = sbr.rel (%p81) target = $region20
        $region19: #{tpu_custom_call.1} parent=15 // pred_region
          %p84 = scmp.lt.s32.totalorder %s10, 1
          %s85 = scalar_select %p84, %s10, 1
          %s86 = smul.addr %s85, 12
          %s87 = smul.addr %s86, 8
          %s88 = scalar_lea.vmem %s0, %s87
        $region20: #{tpu_custom_call.1} parent=15 // pred_fallthru
          _
      $region16: #{tpu_custom_call.1} parent=5 // pred_fallthru
        _
      %p89 = scmp.le.s32.totalorder 1, %s10
      %p90 = scmp.lt.s32.totalorder %s10, 3
      %p91 = pnand %p89, %p90
      %p92 = pneg %p91
      // Predicated region
      $region21: #{tpu_custom_call.1} parent=5 // pred_check
        _
      $region22: #{tpu_custom_call.1} parent=5 // pred_check_branch
        %94 = sbr.rel (%p91) target = $region24
      $region23: #{tpu_custom_call.1} parent=5 // pred_region
        %s95 = ssub.s32 %s10, 1
        %p96 = scmp.lt.s32.totalorder %s15, 1
        %s97 = scalar_select %p96, %s15, 1
        %s98 = smul.addr %s97, 12
        %s99 = smul.addr %s98, 8
        %s100 = scalar_lea.vmem %s0, %s99
        %p101 = pneg %p36
        %p102 = pneg %p33
        %p103 = pneg %p62
        %p104 = pneg %p59
        %s105 = sand.u32 %s49, 1
        %s106 = scalar_lea.sflag [#allocation3], %s105
        %s107 = sand.u32 %s49, 1
        %s108 = smul.addr %s107, 128
        %s109 = scalar_lea.vmem [#allocation2], %s108
        %p110 = scmp.lt.s32.totalorder %s15, 1
        %s111 = scalar_select %p110, %s15, 1
        %s112 = smul.addr %s111, 12
        %s113 = smul.addr %s112, 8
        %s114 = scalar_lea.vmem %s0, %s113
        %v115 = vld [vmem:[%s114] sm:$0xff]
        %v116 = vld [vmem:[%s114 + $0x8] sm:$0xff]
        %v117 = vld [vmem:[%s114 + $0x10] sm:$0x3]
        %v118 = vld [vmem:[%s114 + $0x18] sm:$0xff]
        %v119 = vld [vmem:[%s114 + $0x20] sm:$0xff]
        %v120 = vld [vmem:[%s114 + $0x28] sm:$0x3]
        %v121 = vld [vmem:[%s114 + $0x30] sm:$0xff]
        %v122 = vld [vmem:[%s114 + $0x38] sm:$0xff]
        %v123 = vld [vmem:[%s114 + $0x40] sm:$0x3]
        %v124 = vld [vmem:[%s114 + $0x48] sm:$0xff]
        %v125 = vld [vmem:[%s114 + $0x50] sm:$0xff]
        %v126 = vld [vmem:[%s114 + $0x58] sm:$0x3]
        %v127 = vmul.f32 %v115, %v115
        %v128 = vmul.f32 %v116, %v116
        %v129 = vmul.f32 %v117, %v117
        %v130 = vmul.f32 %v118, %v118
        %v131 = vmul.f32 %v119, %v119
        %v132 = vmul.f32 %v120, %v120
        %v133 = vmul.f32 %v121, %v121
        %v134 = vmul.f32 %v122, %v122
        %v135 = vmul.f32 %v123, %v123
        %v136 = vmul.f32 %v124, %v124
        %v137 = vmul.f32 %v125, %v125
        %v138 = vmul.f32 %v126, %v126
        %vm139 = vcmask 146432
        %v140 = vsel %vm139, %v127, 0.0
        %v141 = vsel %vm139, %v130, 0.0
        %v142 = vadd.f32 %v140, %v141
        %v143 = vsel %vm139, %v133, 0.0
        %v144 = vadd.f32 %v142, %v143
        %v145 = vsel %vm139, %v136, 0.0
        %v146 = vadd.f32 %v144, %v145
        %v147 = vsel %vm139, %v128, 0.0
        %v148 = vsel %vm139, %v131, 0.0
        %v149 = vadd.f32 %v147, %v148
        %v150 = vsel %vm139, %v134, 0.0
        %v151 = vadd.f32 %v149, %v150
        %v152 = vsel %vm139, %v137, 0.0
        %v153 = vadd.f32 %v151, %v152
        %vm154 = vcmask 140288
        %v155 = vsel %vm154, %v129, 0.0
        %v156 = vsel %vm154, %v132, 0.0
        %v157 = vadd.f32 %v155, %v156
        %v158 = vsel %vm154, %v135, 0.0
        %v159 = vadd.f32 %v157, %v158
        %v160 = vsel %vm154, %v138, 0.0
        %v161 = vadd.f32 %v159, %v160
        %v162 = vmax.f32 %v146, 1e-24
        %v163 = vmax.f32 %v153, 1e-24
        %v164 = vmax.f32 %v161, 1e-24
        %v165 = vrsqrt.pop %v162
        %v166 = vrsqrt.pop %v163
        %v167 = vrsqrt.pop %v164
        %180 = vrot.lane.b32.xlu0 %v115, 127
        %v181 = vpop.permute.xlu0 %180
        %182 = vrot.lane.b32.xlu0 %v116, 127
        %v183 = vpop.permute.xlu0 %182
        %184 = vrot.lane.b32.xlu0 %v117, 127
        %v185 = vpop.permute.xlu0 %184
        %186 = vrot.lane.b32.xlu0 %v118, 127
        %v187 = vpop.permute.xlu0 %186
        %188 = vrot.lane.b32.xlu0 %v119, 127
        %v189 = vpop.permute.xlu0 %188
        %190 = vrot.lane.b32.xlu0 %v120, 127
        %v191 = vpop.permute.xlu0 %190
        %192 = vrot.lane.b32.xlu0 %v121, 127
        %v193 = vpop.permute.xlu0 %192
        %194 = vrot.lane.b32.xlu0 %v122, 127
        %v195 = vpop.permute.xlu0 %194
        %196 = vrot.lane.b32.xlu0 %v123, 127
        %v197 = vpop.permute.xlu0 %196
        %198 = vrot.lane.b32.xlu0 %v124, 127
        %v199 = vpop.permute.xlu0 %198
        %200 = vrot.lane.b32.xlu0 %v125, 127
        %v201 = vpop.permute.xlu0 %200
        %202 = vrot.lane.b32.xlu0 %v126, 127
        %v203 = vpop.permute.xlu0 %202
        %v216 = vmul.f32 %v115, %v181
        %v217 = vmul.f32 %v116, %v183
        %v218 = vmul.f32 %v117, %v185
        %v219 = vmul.f32 %v118, %v187
        %v220 = vmul.f32 %v119, %v189
        %v221 = vmul.f32 %v120, %v191
        %v222 = vmul.f32 %v121, %v193
        %v223 = vmul.f32 %v122, %v195
        %v224 = vmul.f32 %v123, %v197
        %v225 = vmul.f32 %v124, %v199
        %v226 = vmul.f32 %v125, %v201
        %v227 = vmul.f32 %v126, %v203
        %vm228 = vcmask 138240
        %v229 = vsel %vm228, %v216, 0.0
        %v230 = vsel %vm228, %v219, 0.0
        %v231 = vadd.f32 %v229, %v230
        %v232 = vsel %vm228, %v222, 0.0
        %v233 = vadd.f32 %v231, %v232
        %v234 = vsel %vm228, %v225, 0.0
        %v235 = vadd.f32 %v233, %v234
        %v236 = vsel %vm228, %v217, 0.0
        %v237 = vsel %vm228, %v220, 0.0
        %v238 = vadd.f32 %v236, %v237
        %v239 = vsel %vm228, %v223, 0.0
        %v240 = vadd.f32 %v238, %v239
        %v241 = vsel %vm228, %v226, 0.0
        %v242 = vadd.f32 %v240, %v241
        %vm243 = vcmask 131072
        %v244 = vsel %vm243, %v218, 0.0
        %v245 = vsel %vm243, %v221, 0.0
        %v246 = vadd.f32 %v244, %v245
        %v247 = vsel %vm243, %v224, 0.0
        %v248 = vadd.f32 %v246, %v247
        %v249 = vsel %vm243, %v227, 0.0
        %v250 = vadd.f32 %v248, %v249
        %v251 = vmul.f32 %v235, %v165
        %v252 = vmul.f32 %v242, %v166
        %v253 = vmul.f32 %v250, %v167
        %257 = vrot.lane.b32.xlu0 %v165, 127
        %v258 = vpop.permute.xlu0 %257
        %259 = vrot.lane.b32.xlu0 %v166, 127
        %v260 = vpop.permute.xlu0 %259
        %261 = vrot.lane.b32.xlu0 %v167, 127
        %v262 = vpop.permute.xlu0 %261
        %v266 = vmul.f32 %v251, %v258
        %v267 = vmul.f32 %v252, %v260
        %v268 = vmul.f32 %v253, %v262
        %v269 = vmax.f32 %v266, 0.0
        %v270 = vmax.f32 %v267, 0.0
        %v271 = vmax.f32 %v268, 0.0
        %275 = vrot.lane.b32.xlu0 %v269, 127
        %v276 = vpop.permute.xlu0 %275
        %277 = vrot.lane.b32.xlu0 %v270, 127
        %v278 = vpop.permute.xlu0 %277
        %279 = vrot.lane.b32.xlu0 %v271, 127
        %v280 = vpop.permute.xlu0 %279
        %s284 = scalar_lea.vmem %s109, 64 [#allocation2]
        %vm285 = vcmask 130049
        %286 = vst.msk [vmem:[%s284 - $0x1] sm:$0xfe] %vm285, %v276
        %vm287 = vcmask 130048
        %288 = vst.msk [vmem:[%s284 + $0x7] sm:$0xff] %vm287, %v278
        %vm289 = vcmask 122880
        %290 = vst.msk [vmem:[%s284 + $0xf] sm:$0x1] %vm289, %v280
        %s291 = scalar_lea.vmem %s109, 48 [#allocation2]
        %292 = vst.msk [vmem:[%s291 - $0x1] sm:$0xfe] %vm285, %v269
        %293 = vst.msk [vmem:[%s291 + $0x7] sm:$0xff] %vm287, %v270
        %294 = vst.msk [vmem:[%s291 + $0xf] sm:$0x1] %vm289, %v271
        %vm295 = vcmask 1046528
        %v296 = vrot.slane %v115, 1
        %v297 = vrot.slane %v116, 1
        %v298 = vsel %vm295, %v296, %v297
        %v299 = vrot.slane %v117, 1
        %v300 = vsel %vm295, %v297, %v299
        %v301 = vrot.slane %v118, 1
        %v302 = vrot.slane %v119, 1
        %v303 = vsel %vm295, %v301, %v302
        %v304 = vrot.slane %v120, 1
        %v305 = vsel %vm295, %v302, %v304
        %v306 = vrot.slane %v121, 1
        %v307 = vrot.slane %v122, 1
        %v308 = vsel %vm295, %v306, %v307
        %v309 = vrot.slane %v123, 1
        %v310 = vsel %vm295, %v307, %v309
        %v311 = vrot.slane %v124, 1
        %v312 = vrot.slane %v125, 1
        %v313 = vsel %vm295, %v311, %v312
        %v314 = vrot.slane %v126, 1
        %v315 = vsel %vm295, %v312, %v314
        %v328 = vmul.f32 %v115, %v298
        %v329 = vmul.f32 %v116, %v300
        %v330 = vmul.f32 %v117, %v299
        %v331 = vmul.f32 %v118, %v303
        %v332 = vmul.f32 %v119, %v305
        %v333 = vmul.f32 %v120, %v304
        %v334 = vmul.f32 %v121, %v308
        %v335 = vmul.f32 %v122, %v310
        %v336 = vmul.f32 %v123, %v309
        %v337 = vmul.f32 %v124, %v313
        %v338 = vmul.f32 %v125, %v315
        %v339 = vmul.f32 %v126, %v314
        %vm340 = vcmask 138248
        %v341 = vsel %vm340, %v328, 0.0
        %v342 = vsel %vm340, %v331, 0.0
        %v343 = vadd.f32 %v341, %v342
        %v344 = vsel %vm340, %v334, 0.0
        %v345 = vadd.f32 %v343, %v344
        %v346 = vsel %vm340, %v337, 0.0
        %v347 = vadd.f32 %v345, %v346
        %v348 = vsel %vm340, %v329, 0.0
        %v349 = vsel %vm340, %v332, 0.0
        %v350 = vadd.f32 %v348, %v349
        %v351 = vsel %vm340, %v335, 0.0
        %v352 = vadd.f32 %v350, %v351
        %v353 = vsel %vm340, %v338, 0.0
        %v354 = vadd.f32 %v352, %v353
        %vm355 = vcmask 131080
        %v356 = vsel %vm355, %v330, 0.0
        %v357 = vsel %vm355, %v333, 0.0
        %v358 = vadd.f32 %v356, %v357
        %v359 = vsel %vm355, %v336, 0.0
        %v360 = vadd.f32 %v358, %v359
        %v361 = vsel %vm355, %v339, 0.0
        %v362 = vadd.f32 %v360, %v361
        %v363 = vmul.f32 %v347, %v165
        %v364 = vmul.f32 %v354, %v166
        %v365 = vmul.f32 %v362, %v167
        %v366 = vrot.slane %v165, 1
        %v367 = vrot.slane %v166, 1
        %v368 = vsel %vm295, %v366, %v367
        %v369 = vrot.slane %v167, 1
        %v370 = vsel %vm295, %v367, %v369
        %v374 = vmul.f32 %v363, %v368
        %v375 = vmul.f32 %v364, %v370
        %v376 = vmul.f32 %v365, %v369
        %v377 = vmax.f32 %v374, 0.0
        %v378 = vmax.f32 %v375, 0.0
        %v379 = vmax.f32 %v376, 0.0
        %383 = vrot.lane.b32.xlu0 %v377, 127
        %v384 = vpop.permute.xlu0 %383
        %385 = vrot.lane.b32.xlu0 %v378, 127
        %v386 = vpop.permute.xlu0 %385
        %387 = vrot.lane.b32.xlu0 %v379, 127
        %v388 = vpop.permute.xlu0 %387
        %s392 = scalar_lea.vmem %s109, 96 [#allocation2]
        %393 = vst.msk [vmem:[%s392 - $0x1] sm:$0xfe] %vm285, %v384
        %394 = vst.msk [vmem:[%s392 + $0x7] sm:$0xff] %vm287, %v386
        %395 = vst.msk [vmem:[%s392 + $0xf] sm:$0x1] %vm289, %v388
        %s396 = scalar_lea.vmem %s109, 16 [#allocation2]
        %397 = vst.msk [vmem:[%s396] sm:$0xff] %vm287, %v384
        %398 = vst.msk [vmem:[%s396 + $0x8] sm:$0xff] %vm287, %v386
        %399 = vrot.lane.b32.xlu0 %v298, 127
        %v400 = vpop.permute.xlu0 %399
        %401 = vrot.lane.b32.xlu0 %v300, 127
        %v402 = vpop.permute.xlu0 %401
        %403 = vrot.lane.b32.xlu0 %v299, 127
        %v404 = vpop.permute.xlu0 %403
        %405 = vrot.lane.b32.xlu0 %v303, 127
        %v406 = vpop.permute.xlu0 %405
        %407 = vrot.lane.b32.xlu0 %v305, 127
        %v408 = vpop.permute.xlu0 %407
        %409 = vrot.lane.b32.xlu0 %v304, 127
        %v410 = vpop.permute.xlu0 %409
        %411 = vrot.lane.b32.xlu0 %v308, 127
        %v412 = vpop.permute.xlu0 %411
        %413 = vrot.lane.b32.xlu0 %v310, 127
        %v414 = vpop.permute.xlu0 %413
        %415 = vrot.lane.b32.xlu0 %v309, 127
        %v416 = vpop.permute.xlu0 %415
        %417 = vrot.lane.b32.xlu0 %v313, 127
        %v418 = vpop.permute.xlu0 %417
        %419 = vrot.lane.b32.xlu0 %v315, 127
        %v420 = vpop.permute.xlu0 %419
        %421 = vrot.lane.b32.xlu0 %v314, 127
        %v422 = vpop.permute.xlu0 %421
        %v435 = vmul.f32 %v115, %v400
        %v436 = vmul.f32 %v116, %v402
        %v437 = vmul.f32 %v117, %v404
        %v438 = vmul.f32 %v118, %v406
        %v439 = vmul.f32 %v119, %v408
        %v440 = vmul.f32 %v120, %v410
        %v441 = vmul.f32 %v121, %v412
        %v442 = vmul.f32 %v122, %v414
        %v443 = vmul.f32 %v123, %v416
        %v444 = vmul.f32 %v124, %v418
        %v445 = vmul.f32 %v125, %v420
        %v446 = vmul.f32 %v126, %v422
        %v447 = vsel %vm228, %v435, 0.0
        %v448 = vsel %vm228, %v438, 0.0
        %v449 = vadd.f32 %v447, %v448
        %v450 = vsel %vm228, %v441, 0.0
        %v451 = vadd.f32 %v449, %v450
        %v452 = vsel %vm228, %v444, 0.0
        %v453 = vadd.f32 %v451, %v452
        %v454 = vsel %vm228, %v436, 0.0
        %v455 = vsel %vm228, %v439, 0.0
        %v456 = vadd.f32 %v454, %v455
        %v457 = vsel %vm228, %v442, 0.0
        %v458 = vadd.f32 %v456, %v457
        %v459 = vsel %vm228, %v445, 0.0
        %v460 = vadd.f32 %v458, %v459
        %v461 = vsel %vm243, %v437, 0.0
        %v462 = vsel %vm243, %v440, 0.0
        %v463 = vadd.f32 %v461, %v462
        %v464 = vsel %vm243, %v443, 0.0
        %v465 = vadd.f32 %v463, %v464
        %v466 = vsel %vm243, %v446, 0.0
        %v467 = vadd.f32 %v465, %v466
        %v468 = vmul.f32 %v453, %v165
        %v469 = vmul.f32 %v460, %v166
        %v470 = vmul.f32 %v467, %v167
        %471 = vrot.lane.b32.xlu0 %v368, 127
        %v472 = vpop.permute.xlu0 %471
        %473 = vrot.lane.b32.xlu0 %v370, 127
        %v474 = vpop.permute.xlu0 %473
        %475 = vrot.lane.b32.xlu0 %v369, 127
        %v476 = vpop.permute.xlu0 %475
        %v480 = vmul.f32 %v468, %v472
        %v481 = vmul.f32 %v469, %v474
        %v482 = vmul.f32 %v470, %v476
        %v483 = vmax.f32 %v480, 0.0
        %v484 = vmax.f32 %v481, 0.0
        %v485 = vmax.f32 %v482, 0.0
        %489 = vrot.lane.b32.xlu0 %v483, 127
        %v490 = vpop.permute.xlu0 %489
        %491 = vrot.lane.b32.xlu0 %v484, 127
        %v492 = vpop.permute.xlu0 %491
        %493 = vrot.lane.b32.xlu0 %v485, 127
        %v494 = vpop.permute.xlu0 %493
        %s498 = scalar_lea.vmem %s109, 112 [#allocation2]
        %499 = vst.msk [vmem:[%s498 - $0x1] sm:$0xfe] %vm285, %v490
        %500 = vst.msk [vmem:[%s498 + $0x7] sm:$0xff] %vm287, %v492
        %501 = vst.msk [vmem:[%s498 + $0xf] sm:$0x1] %vm289, %v494
        %502 = vst.msk [vmem:[%s109] sm:$0xff] %vm287, %v483
        %503 = vst.msk [vmem:[%s109 + $0x8] sm:$0xff] %vm287, %v484
        %504 = vrot.lane.b32.xlu0 %v298, 1
        %v505 = vpop.permute.xlu0 %504
        %506 = vrot.lane.b32.xlu0 %v300, 1
        %v507 = vpop.permute.xlu0 %506
        %508 = vrot.lane.b32.xlu0 %v299, 1
        %v509 = vpop.permute.xlu0 %508
        %510 = vrot.lane.b32.xlu0 %v303, 1
        %v511 = vpop.permute.xlu0 %510
        %512 = vrot.lane.b32.xlu0 %v305, 1
        %v513 = vpop.permute.xlu0 %512
        %514 = vrot.lane.b32.xlu0 %v304, 1
        %v515 = vpop.permute.xlu0 %514
        %516 = vrot.lane.b32.xlu0 %v308, 1
        %v517 = vpop.permute.xlu0 %516
        %518 = vrot.lane.b32.xlu0 %v310, 1
        %v519 = vpop.permute.xlu0 %518
        %520 = vrot.lane.b32.xlu0 %v309, 1
        %v521 = vpop.permute.xlu0 %520
        %522 = vrot.lane.b32.xlu0 %v313, 1
        %v523 = vpop.permute.xlu0 %522
        %524 = vrot.lane.b32.xlu0 %v315, 1
        %v525 = vpop.permute.xlu0 %524
        %526 = vrot.lane.b32.xlu0 %v314, 1
        %v527 = vpop.permute.xlu0 %526
        %v540 = vmul.f32 %v115, %v505
        %v541 = vmul.f32 %v116, %v507
        %v542 = vmul.f32 %v117, %v509
        %v543 = vmul.f32 %v118, %v511
        %v544 = vmul.f32 %v119, %v513
        %v545 = vmul.f32 %v120, %v515
        %v546 = vmul.f32 %v121, %v517
        %v547 = vmul.f32 %v122, %v519
        %v548 = vmul.f32 %v123, %v521
        %v549 = vmul.f32 %v124, %v523
        %v550 = vmul.f32 %v125, %v525
        %v551 = vmul.f32 %v126, %v527
        %vm552 = vcmask 146440
        %v553 = vsel %vm552, %v540, 0.0
        %v554 = vsel %vm552, %v543, 0.0
        %v555 = vadd.f32 %v553, %v554
        %v556 = vsel %vm552, %v546, 0.0
        %v557 = vadd.f32 %v555, %v556
        %v558 = vsel %vm552, %v549, 0.0
        %v559 = vadd.f32 %v557, %v558
        %v560 = vsel %vm552, %v541, 0.0
        %v561 = vsel %vm552, %v544, 0.0
        %v562 = vadd.f32 %v560, %v561
        %v563 = vsel %vm552, %v547, 0.0
        %v564 = vadd.f32 %v562, %v563
        %v565 = vsel %vm552, %v550, 0.0
        %v566 = vadd.f32 %v564, %v565
        %vm567 = vcmask 139272
        %v568 = vsel %vm567, %v542, 0.0
        %v569 = vsel %vm567, %v545, 0.0
        %v570 = vadd.f32 %v568, %v569
        %v571 = vsel %vm567, %v548, 0.0
        %v572 = vadd.f32 %v570, %v571
        %v573 = vsel %vm567, %v551, 0.0
        %v574 = vadd.f32 %v572, %v573
        %v575 = vmul.f32 %v559, %v165
        %v576 = vmul.f32 %v566, %v166
        %v577 = vmul.f32 %v574, %v167
        %578 = vrot.lane.b32.xlu0 %v368, 1
        %v579 = vpop.permute.xlu0 %578
        %580 = vrot.lane.b32.xlu0 %v370, 1
        %v581 = vpop.permute.xlu0 %580
        %582 = vrot.lane.b32.xlu0 %v369, 1
        %v583 = vpop.permute.xlu0 %582
        %v587 = vmul.f32 %v575, %v579
        %v588 = vmul.f32 %v576, %v581
        %v589 = vmul.f32 %v577, %v583
        %v590 = vmax.f32 %v587, 0.0
        %v591 = vmax.f32 %v588, 0.0
        %v592 = vmax.f32 %v589, 0.0
        %596 = vrot.lane.b32.xlu0 %v590, 127
        %v597 = vpop.permute.xlu0 %596
        %598 = vrot.lane.b32.xlu0 %v591, 127
        %v599 = vpop.permute.xlu0 %598
        %600 = vrot.lane.b32.xlu0 %v592, 127
        %v601 = vpop.permute.xlu0 %600
        %s605 = scalar_lea.vmem %s109, 80 [#allocation2]
        %606 = vst.msk [vmem:[%s605 - $0x1] sm:$0xfe] %vm285, %v597
        %607 = vst.msk [vmem:[%s605 + $0x7] sm:$0xff] %vm287, %v599
        %608 = vst.msk [vmem:[%s605 + $0xf] sm:$0x1] %vm289, %v601
        %609 = vrot.lane.b32.xlu0 %v590, 126
        %v610 = vpop.permute.xlu0 %609
        %611 = vrot.lane.b32.xlu0 %v591, 126
        %v612 = vpop.permute.xlu0 %611
        %s615 = scalar_lea.vmem %s109, 32 [#allocation2]
        %616 = vst.msk [vmem:[%s615] sm:$0xff] %vm287, %v610
        %617 = vst.msk [vmem:[%s615 + $0x8] sm:$0xff] %vm287, %v612
        %s618 = sand.u32 %s49, 1
        %s619 = scalar_lea.sflag [#allocation3], %s618
        %s620 = sand.u32 %s49, 1
        %s621 = smul.addr %s620, 128
        %s622 = scalar_lea.vmem [#allocation2], %s621
        // Predicated region
        $region25: #{tpu_custom_call.1} parent=23 // pred_check
          %p623 = pneg %p59
        $region26: #{tpu_custom_call.1} parent=23 // pred_check_branch
          %625 = sbr.rel (%p623) target = $region28
        $region27: #{tpu_custom_call.1} parent=23 // pred_region
          %s627 = ssub.s32 2048, 2048
          %628 = vsyncadd %s619, %s627
          %s629 = smul.addr %s15, 16
          %s630 = smul.addr %s629, 128
          %s631 = scalar_lea.hbm %s1, %s630
          %s632 = sshll.u32 %s622, 4
          %s633 = int_to_ptr.vmem [resolvable:$true] %s632
          %638 = dma.vmem_to_hbm [thread:$0]  %s633, 2048, %s631, %s619, 128, 128, 8
        $region28: #{tpu_custom_call.1} parent=23 // pred_fallthru
          _
      $region24: #{tpu_custom_call.1} parent=5 // pred_fallthru
        _
      %p639 = scmp.le.s32.totalorder 2, %s10
      // Predicated region
      $region29: #{tpu_custom_call.1} parent=5 // pred_check
        %p640 = pneg %p639
      $region30: #{tpu_custom_call.1} parent=5 // pred_check_branch
        %642 = sbr.rel (%p640) target = $region32
      $region31: #{tpu_custom_call.1} parent=5 // pred_region
        %s643 = ssub.s32 %s10, 2
        // Predicated region
        $region33: #{tpu_custom_call.1} parent=31 // pred_check
          %p644 = pneg %p65
        $region34: #{tpu_custom_call.1} parent=31 // pred_check_branch
          %646 = sbr.rel (%p644) target = $region36
        $region35: #{tpu_custom_call.1} parent=31 // pred_region
          %s647 = sand.u32 %s50, 1
          %s648 = scalar_lea.sflag [#allocation3], %s647
          %s649 = sand.u32 %s50, 1
          %s650 = smul.addr %s649, 128
          %s651 = scalar_lea.vmem [#allocation2], %s650
          %652 = dma.done %s648, 2048
        $region36: #{tpu_custom_call.1} parent=31 // pred_fallthru
          _
      $region32: #{tpu_custom_call.1} parent=5 // pred_fallthru
        _
    $region6: #{tpu_custom_call.1} parent=1 // loop_footer
      %s14 = sadd.s32 1, %s10
    $region7: #{tpu_custom_call.1} parent=1 // loop_footer_branch
      %9 = sbr.rel target = $region3
    $region8: #{tpu_custom_call.1} parent=1 // loop_exit
      _
    %653 = vsyncpa [#allocation3], 1
    %s654 = scalar_lea.sflag [#allocation3], 1
    %655 = vsyncpa %s654, 1

</llo_original>
